<compile_context>
chip_gen: v7x
topology: tpu7x:2x2x1
jax: 0.10.0
libtpu: 0.0.40
codegen_flags: <defaults>
</compile_context>

<pallas_src>
import jax
import jax.numpy as jnp
from jax import lax
from jax.experimental import pallas as pl
from jax.experimental.pallas import tpu as pltpu

# Contract the last axis of both operands: (m, k) x (n, k) -> (m, n), no transpose.
_CONTRACT_LAST = (((1,), (1,)), ((), ()))


def _lora_linear_kernel(scale, x_ref, w_ref, b_ref, a_ref, lb_ref, o_ref,
                        acc_ref, xr_ref):
    k = pl.program_id(2)

    @pl.when(k == 0)
    def _():
        acc_ref[...] = jnp.zeros_like(acc_ref)
        xr_ref[...] = jnp.zeros_like(xr_ref)

    x = x_ref[...]  # (tm, tk) bf16

    # Base path: X_tile (tm, tk) . W_tile (tn, tk) -> (tm, tn), f32 accumulation.
    acc_ref[...] += lax.dot_general(
        x, w_ref[...], dimension_numbers=_CONTRACT_LAST,
        preferred_element_type=jnp.float32)

    # LoRA low-rank intermediate: X_tile (tm, tk) . B_tile (rank, tk) -> (tm, rank).
    xr_ref[...] += lax.dot_general(
        x, lb_ref[...], dimension_numbers=_CONTRACT_LAST,
        preferred_element_type=jnp.float32)

    @pl.when(k == pl.num_programs(2) - 1)
    def _():
        # Fold the scale into the tiny (tm, rank) intermediate, then expand once
        # with A_tile (tn, rank): (tm, rank) . (tn, rank) -> (tm, tn).
        lora = lax.dot_general(
            scale * xr_ref[...], a_ref[...], dimension_numbers=_CONTRACT_LAST,
            preferred_element_type=jnp.float32)
        o_ref[...] = (acc_ref[...] + b_ref[...] + lora).astype(o_ref.dtype)


def _choose_tile(dim, preferred, base):
    """Largest tile <= preferred that is a multiple of `base` and divides `dim`."""
    if dim <= preferred:
        return dim
    t = (min(preferred, dim) // base) * base
    while t >= base:
        if dim % t == 0:
            return t
        t -= base
    return dim  # fall back to full extent (no tiling on this axis)


def lora_linear_forward(x, weight, bias, lora_a, lora_b, scale,
                        tm=256, tn=256, tk=512,
                        compute_dtype=jnp.bfloat16):
    """x: (batch, seq, in_features). Returns (batch, seq, out_features) in x.dtype."""
    batch, seq, in_features = x.shape
    out_features = weight.shape[0]
    rank = lora_a.shape[1]
    m = batch * seq

    tm = _choose_tile(m, tm, 8)
    tn = _choose_tile(out_features, tn, 128)
    tk = _choose_tile(in_features, tk, 128)

    # bf16 for the streamed MXU operands (halves HBM + VMEM traffic); f32 for the
    # epilogue-only operands (bias, A).
    x2d = x.reshape(m, in_features).astype(compute_dtype)
    w = weight.astype(compute_dtype)
    lb = lora_b.astype(compute_dtype)
    bias2d = bias.reshape(1, out_features).astype(jnp.float32)
    a = lora_a.astype(jnp.float32)

    grid = (m // tm, out_features // tn, in_features // tk)

    kernel = lambda *refs: _lora_linear_kernel(scale, *refs)

    flops = (2 * m * out_features * in_features      # base GEMM
             + 2 * m * rank * in_features            # X @ B^T
             + 2 * m * rank * out_features)          # xr @ A^T
    bytes_accessed = (x2d.size * x2d.dtype.itemsize
                      + w.size * w.dtype.itemsize
                      + lb.size * lb.dtype.itemsize
                      + a.size * a.dtype.itemsize
                      + bias2d.size * bias2d.dtype.itemsize
                      + m * out_features * jnp.dtype(x.dtype).itemsize)

    out2d = pl.pallas_call(
        kernel,
        out_shape=jax.ShapeDtypeStruct((m, out_features), x.dtype),
        grid_spec=pltpu.PrefetchScalarGridSpec(
            num_scalar_prefetch=0,
            grid=grid,
            in_specs=[
                pl.BlockSpec((tm, tk), lambda i, j, k: (i, k)),      # X
                pl.BlockSpec((tn, tk), lambda i, j, k: (j, k)),      # W
                pl.BlockSpec((1, tn), lambda i, j, k: (0, j)),       # bias
                pl.BlockSpec((tn, rank), lambda i, j, k: (j, 0)),    # A (lora_a)
                pl.BlockSpec((rank, tk), lambda i, j, k: (0, k)),    # B (lora_b)
            ],
            out_specs=pl.BlockSpec((tm, tn), lambda i, j, k: (i, j)),
            scratch_shapes=[
                pltpu.VMEM((tm, tn), jnp.float32),    # base accumulator
                pltpu.VMEM((tm, rank), jnp.float32),  # low-rank accumulator
            ],
        ),
        compiler_params=pltpu.CompilerParams(
            dimension_semantics=("parallel", "parallel", "arbitrary"),
            vmem_limit_bytes=32 * 1024 * 1024,
        ),
        cost_estimate=pl.CostEstimate(
            flops=flops, transcendentals=0, bytes_accessed=bytes_accessed),
    )(x2d, w, bias2d, a, lb)

    return out2d.reshape(batch, seq, out_features)


def init_params(key, in_features, out_features, rank):
    """Deterministic synthetic init matching the PyTorch module's parameter shapes."""
    k_w, k_b, k_a = jax.random.split(key, 3)
    # nn.Linear default init: U(-1/sqrt(in), 1/sqrt(in))
    bound = 1.0 / (in_features ** 0.5)
    weight = jax.random.uniform(k_w, (out_features, in_features), jnp.float32,
                                minval=-bound, maxval=bound)
    bias = jax.random.uniform(k_b, (out_features,), jnp.float32,
                              minval=-bound, maxval=bound)
    # kaiming_normal_(lora_a, a=0.01): std = sqrt(2/(1+a^2)) / sqrt(fan_in), fan_in = rank
    gain = (2.0 / (1.0 + 0.01 ** 2)) ** 0.5
    std = gain / (rank ** 0.5)
    lora_a = std * jax.random.normal(k_a, (out_features, rank), jnp.float32)
    # lora_b initialized to zeros (as in the module)
    lora_b = jnp.zeros((rank, in_features), jnp.float32)
    return weight, bias, lora_a, lora_b


if __name__ == "__main__":
    # Lane-dense small shapes (multiples of 8/128) so output stores are unmasked.
    in_features = 128
    out_features = 128
    rank = 8
    lora_alpha = 16
    scale = lora_alpha / rank
    batch, seq = 2, 16   # M = 32

    key = jax.random.PRNGKey(0)
    k_x, k_p = jax.random.split(key)
    x = jax.random.normal(k_x, (batch, seq, in_features), jnp.float32)
    weight, bias, lora_a, lora_b = init_params(k_p, in_features, out_features, rank)
    # Make the LoRA branch numerically non-trivial for the check.
    lora_b = 0.02 * jax.random.normal(jax.random.PRNGKey(1), (rank, in_features),
                                      jnp.float32)

    out = lora_linear_forward(x, weight, bias, lora_a, lora_b, scale)
    out = jax.block_until_ready(out)

    # Reference 1: pure-JAX with the same bf16-compute / f32-accumulate recipe.
    x2d = x.reshape(-1, in_features)
    xb = x2d.astype(jnp.bfloat16)
    wb = weight.astype(jnp.bfloat16)
    lbb = lora_b.astype(jnp.bfloat16)
    base = jnp.dot(xb, wb.T, preferred_element_type=jnp.float32) + bias
    xr = jnp.dot(xb, lbb.T, preferred_element_type=jnp.float32)
    lora = jnp.dot(scale * xr, lora_a.T, preferred_element_type=jnp.float32)
    ref_bf16 = (base + lora).reshape(batch, seq, out_features)
    assert jnp.allclose(out, ref_bf16, atol=5e-3, rtol=5e-3), \
        "mismatch vs bf16-compute reference"

    # Reference 2: full-f32 module semantics (loose tolerance for bf16 MXU compute).
    ref_f32 = (x2d @ weight.T + bias
               + scale * (x2d @ (lora_a @ lora_b).T)).reshape(batch, seq, out_features)
    assert jnp.allclose(out, ref_f32, atol=5e-2, rtol=5e-2), \
        "mismatch vs f32 reference"

    print("KERNEL_OK")
</pallas_src>

<mosaic_0001>
module attributes {stable_mosaic.version = 11 : i64} {
  func.func @_lambda_(%arg0: i32, %arg1: i32, %arg2: i32, %arg3: memref<32x128xbf16, #tpu.memory_space<vmem>>, %arg4: memref<128x128xbf16, #tpu.memory_space<vmem>>, %arg5: memref<1x128xf32, #tpu.memory_space<vmem>>, %arg6: memref<128x8xf32, #tpu.memory_space<vmem>>, %arg7: memref<8x128xbf16, #tpu.memory_space<vmem>>, %arg8: memref<32x128xf32, #tpu.memory_space<vmem>>, %arg9: memref<32x128xf32, #tpu.memory_space<vmem>>, %arg10: memref<32x8xf32, #tpu.memory_space<vmem>>) attributes {dimension_semantics = [#tpu.dimension_semantics<parallel>, #tpu.dimension_semantics<parallel>, #tpu.dimension_semantics<arbitrary>], iteration_bounds = array<i64: 1, 1, 1>, scalar_prefetch = 0 : i64, scratch_operands = 2 : i64, tpu.core_type = #tpu.core_type<tc>, window_params = [{transform_indices = @transform_0, window_bounds = array<i64: 32, 128>}, {transform_indices = @transform_1, window_bounds = array<i64: 128, 128>}, {transform_indices = @transform_2, window_bounds = array<i64: 1, 128>}, {transform_indices = @transform_3, window_bounds = array<i64: 128, 8>}, {transform_indices = @transform_4, window_bounds = array<i64: 8, 128>}, {transform_indices = @transform_5, window_bounds = array<i64: 32, 128>}]} {
    %c0_i32 = arith.constant 0 : i32
    %0 = arith.cmpi eq, %arg2, %c0_i32 : i32
    %1 = arith.extui %0 : i1 to i32
    %c0_i32_0 = arith.constant 0 : i32
    %2 = arith.cmpi ne, %1, %c0_i32_0 : i32
    scf.if %2 {
      %cst_17 = arith.constant 0.000000e+00 : f32
      %17 = vector.broadcast %cst_17 : f32 to vector<32x128xf32>
      %c0_18 = arith.constant 0 : index
      %c0_19 = arith.constant 0 : index
      %18 = vector.load %arg9[%c0_18, %c0_19] : memref<32x128xf32, #tpu.memory_space<vmem>>, vector<32x128xf32>
      tpu.vector_store %arg9[%c0_18, %c0_19], %17 {strides = array<i32>} : memref<32x128xf32, #tpu.memory_space<vmem>>, vector<32x128xf32>,
      %cst_20 = arith.constant 0.000000e+00 : f32
      %19 = vector.broadcast %cst_20 : f32 to vector<32x8xf32>
      %c0_21 = arith.constant 0 : index
      %c0_22 = arith.constant 0 : index
      %20 = vector.load %arg10[%c0_21, %c0_22] : memref<32x8xf32, #tpu.memory_space<vmem>>, vector<32x8xf32>
      tpu.vector_store %arg10[%c0_21, %c0_22], %19 {strides = array<i32>} : memref<32x8xf32, #tpu.memory_space<vmem>>, vector<32x8xf32>,
    } else {
    }
    %c0 = arith.constant 0 : index
    %c0_1 = arith.constant 0 : index
    %3 = vector.load %arg3[%c0, %c0_1] : memref<32x128xbf16, #tpu.memory_space<vmem>>, vector<32x128xbf16>
    %c0_2 = arith.constant 0 : index
    %c0_3 = arith.constant 0 : index
    %4 = vector.load %arg9[%c0_2, %c0_3] : memref<32x128xf32, #tpu.memory_space<vmem>>, vector<32x128xf32>
    %c0_4 = arith.constant 0 : index
    %c0_5 = arith.constant 0 : index
    %5 = vector.load %arg4[%c0_4, %c0_5] : memref<128x128xbf16, #tpu.memory_space<vmem>>, vector<128x128xbf16>
    %cst = arith.constant dense<0.000000e+00> : vector<32x128xf32>
    %6 = tpu.matmul %3, %5, %cst {dimension_numbers = #tpu.dot_dimension_numbers<[1], [1], [0], [0], [0, 0, 1, 0], [], []>} : vector<32x128xbf16>, vector<128x128xbf16>, vector<32x128xf32> -> vector<32x128xf32>
    %7 = arith.addf %4, %6 : vector<32x128xf32>
    %c0_6 = arith.constant 0 : index
    %c0_7 = arith.constant 0 : index
    %8 = vector.load %arg9[%c0_6, %c0_7] : memref<32x128xf32, #tpu.memory_space<vmem>>, vector<32x128xf32>
    tpu.vector_store %arg9[%c0_6, %c0_7], %7 {strides = array<i32>} : memref<32x128xf32, #tpu.memory_space<vmem>>, vector<32x128xf32>,
    %c0_8 = arith.constant 0 : index
    %c0_9 = arith.constant 0 : index
    %9 = vector.load %arg10[%c0_8, %c0_9] : memref<32x8xf32, #tpu.memory_space<vmem>>, vector<32x8xf32>
    %c0_10 = arith.constant 0 : index
    %c0_11 = arith.constant 0 : index
    %10 = vector.load %arg7[%c0_10, %c0_11] : memref<8x128xbf16, #tpu.memory_space<vmem>>, vector<8x128xbf16>
    %cst_12 = arith.constant dense<0.000000e+00> : vector<32x8xf32>
    %11 = tpu.matmul %3, %10, %cst_12 {dimension_numbers = #tpu.dot_dimension_numbers<[1], [1], [0], [0], [0, 0, 1, 0], [], []>} : vector<32x128xbf16>, vector<8x128xbf16>, vector<32x8xf32> -> vector<32x8xf32>
    %12 = arith.addf %9, %11 : vector<32x8xf32>
    %c0_13 = arith.constant 0 : index
    %c0_14 = arith.constant 0 : index
    %13 = vector.load %arg10[%c0_13, %c0_14] : memref<32x8xf32, #tpu.memory_space<vmem>>, vector<32x8xf32>
    tpu.vector_store %arg10[%c0_13, %c0_14], %12 {strides = array<i32>} : memref<32x8xf32, #tpu.memory_space<vmem>>, vector<32x8xf32>,
    %c0_i32_15 = arith.constant 0 : i32
    %14 = arith.cmpi eq, %arg2, %c0_i32_15 : i32
    %15 = arith.extui %14 : i1 to i32
    %c0_i32_16 = arith.constant 0 : i32
    %16 = arith.cmpi ne, %15, %c0_i32_16 : i32
    scf.if %16 {
      %c0_17 = arith.constant 0 : index
      %c0_18 = arith.constant 0 : index
      %17 = vector.load %arg10[%c0_17, %c0_18] : memref<32x8xf32, #tpu.memory_space<vmem>>, vector<32x8xf32>
      %cst_19 = arith.constant 2.000000e+00 : f32
      %18 = vector.broadcast %cst_19 : f32 to vector<32x8xf32>
      %19 = arith.mulf %18, %17 : vector<32x8xf32>
      %c0_20 = arith.constant 0 : index
      %c0_21 = arith.constant 0 : index
      %20 = vector.load %arg6[%c0_20, %c0_21] : memref<128x8xf32, #tpu.memory_space<vmem>>, vector<128x8xf32>
      %cst_22 = arith.constant dense<0.000000e+00> : vector<32x128xf32>
      %21 = tpu.matmul %19, %20, %cst_22 {dimension_numbers = #tpu.dot_dimension_numbers<[1], [1], [0], [0], [0, 0, 1, 0], [], []>} : vector<32x8xf32>, vector<128x8xf32>, vector<32x128xf32> -> vector<32x128xf32>
      %c0_23 = arith.constant 0 : index
      %c0_24 = arith.constant 0 : index
      %22 = vector.load %arg9[%c0_23, %c0_24] : memref<32x128xf32, #tpu.memory_space<vmem>>, vector<32x128xf32>
      %c0_25 = arith.constant 0 : index
      %c0_26 = arith.constant 0 : index
      %23 = vector.load %arg5[%c0_25, %c0_26] : memref<1x128xf32, #tpu.memory_space<vmem>>, vector<1x128xf32>
      %24 = vector.broadcast %23 : vector<1x128xf32> to vector<32x128xf32>
      %25 = arith.addf %22, %24 : vector<32x128xf32>
      %26 = arith.addf %25, %21 : vector<32x128xf32>
      %c0_27 = arith.constant 0 : index
      %c0_28 = arith.constant 0 : index
      %27 = vector.load %arg8[%c0_27, %c0_28] : memref<32x128xf32, #tpu.memory_space<vmem>>, vector<32x128xf32>
      tpu.vector_store %arg8[%c0_27, %c0_28], %26 {strides = array<i32>} : memref<32x128xf32, #tpu.memory_space<vmem>>, vector<32x128xf32>,
    } else {
    }
    return
  }
  func.func @transform_0(%arg0: i32, %arg1: i32, %arg2: i32) -> (i32, i32) {
    %c0_i32 = arith.constant 0 : i32
    return %arg0, %arg2 : i32, i32
  }
  func.func @transform_1(%arg0: i32, %arg1: i32, %arg2: i32) -> (i32, i32) {
    %c0_i32 = arith.constant 0 : i32
    return %arg1, %arg2 : i32, i32
  }
  func.func @transform_2(%arg0: i32, %arg1: i32, %arg2: i32) -> (i32, i32) {
    %c0_i32 = arith.constant 0 : i32
    %c0_i32_0 = arith.constant 0 : i32
    return %c0_i32, %arg1 : i32, i32
  }
  func.func @transform_3(%arg0: i32, %arg1: i32, %arg2: i32) -> (i32, i32) {
    %c0_i32 = arith.constant 0 : i32
    %c0_i32_0 = arith.constant 0 : i32
    return %arg1, %c0_i32 : i32, i32
  }
  func.func @transform_4(%arg0: i32, %arg1: i32, %arg2: i32) -> (i32, i32) {
    %c0_i32 = arith.constant 0 : i32
    %c0_i32_0 = arith.constant 0 : i32
    return %c0_i32, %arg2 : i32, i32
  }
  func.func @transform_5(%arg0: i32, %arg1: i32, %arg2: i32) -> (i32, i32) {
    %c0_i32 = arith.constant 0 : i32
    return %arg0, %arg1 : i32, i32
  }
}

</mosaic_0001>

<llo_original>
// kernel: tpu_custom_call.1
$region0: #{tpu_custom_call.1}
  #allocation0 [shape = 'u32[]', space=smem, size = 0x4, offset = 0x4, fixed_abs, tag = 'smem constant byte address 0x4 - core index']
  #allocation1 [shape = 'u32[144,128]{1,0:T(1,128)}', space=vmem, size = 0x12000, scoped, tag = 'internal scratch']
  #allocation2 [shape = 'f32[32,128]{1,0:T(8,128)}', space=vmem, size = 0x4000, scoped, tag = 'scratch operand']
  #allocation3 [shape = 'f32[32,8]{1,0:T(8,128)}', space=vmem, size = 0x4000, scoped, tag = 'scratch operand']
  %s0 = inlined_call_operand.vmem [shape: bf16[32,128], index: 0, kind: input, shape index: {}]
  %s1 = inlined_call_operand.vmem [shape: bf16[128,128], index: 1, kind: input, shape index: {}]
  %s2 = inlined_call_operand.vmem [shape: f32[1,128], index: 2, kind: input, shape index: {}]
  %s3 = inlined_call_operand.vmem [shape: f32[128,8], index: 3, kind: input, shape index: {}]
  %s4 = inlined_call_operand.vmem [shape: bf16[8,128], index: 4, kind: input, shape index: {}]
  %s5 = inlined_call_operand.hbm [shape: f32[32,128], index: 5, kind: output, shape index: {}]
  %s6 = sld [smem:[#allocation0]]
  $region38: #{tpu_custom_call.1} parent=0
    _
  %s8 = ssub.s32 1, %s6
  %s9 = scalar_select 0, %s8, %s6
  $region1: #{tpu_custom_call.1} parent=0
    #allocation4 [shape = 'u8[16384]{0}', space=vmem, size = 0x4000, scoped, tag = 'output window, operand 0, single buffered']
    #allocation5 [shape = 's32[1]{0}', space=sflag, size = 0x4, scoped, tag = 'scoped memory for tpu_custom_call.1']
    %10 = vsyncpa [#allocation5], 0
    // Predicated region
    $region2: #{tpu_custom_call.1} parent=1 // pred_check
      _
    $region3: #{tpu_custom_call.1} parent=1 // pred_check_branch
      %12 = sbr.rel (0) target = $region5
    $region4: #{tpu_custom_call.1} parent=1 // pred_region
      _
    $region5: #{tpu_custom_call.1} parent=1 // pred_fallthru
      _
    // Predicated region
    $region6: #{tpu_custom_call.1} parent=1 // pred_check
      _
    $region7: #{tpu_custom_call.1} parent=1 // pred_check_branch
      %14 = sbr.rel (0) target = $region9
    $region8: #{tpu_custom_call.1} parent=1 // pred_region
      _
    $region9: #{tpu_custom_call.1} parent=1 // pred_fallthru
      _
    // Predicated region
    $region10: #{tpu_custom_call.1} parent=1 // pred_check
      _
    $region11: #{tpu_custom_call.1} parent=1 // pred_check_branch
      %16 = sbr.rel (0) target = $region13
    $region12: #{tpu_custom_call.1} parent=1 // pred_region
      _
    $region13: #{tpu_custom_call.1} parent=1 // pred_fallthru
      _
    // Predicated region
    $region14: #{tpu_custom_call.1} parent=1 // pred_check
      _
    $region15: #{tpu_custom_call.1} parent=1 // pred_check_branch
      %18 = sbr.rel (0) target = $region17
    $region16: #{tpu_custom_call.1} parent=1 // pred_region
      _
    $region17: #{tpu_custom_call.1} parent=1 // pred_fallthru
      _
    // Predicated region
    $region18: #{tpu_custom_call.1} parent=1 // pred_check
      _
    $region19: #{tpu_custom_call.1} parent=1 // pred_check_branch
      %20 = sbr.rel (0) target = $region21
    $region20: #{tpu_custom_call.1} parent=1 // pred_region
      _
    $region21: #{tpu_custom_call.1} parent=1 // pred_fallthru
      _
    %p22 = scmp.eq.s32.totalorder 0, 0
    // Predicated region
    $region22: #{tpu_custom_call.1} parent=1 // pred_check
      %p23 = pneg %p22
    $region23: #{tpu_custom_call.1} parent=1 // pred_check_branch
      %25 = sbr.rel (%p23) target = $region25
    $region24: #{tpu_custom_call.1} parent=1 // pred_region
      %26 = vst [vmem:[#allocation2] sm:$0xff] 0.0
      %27 = vst [vmem:[#allocation2 + $0x8] sm:$0xff] 0.0
      %28 = vst [vmem:[#allocation2 + $0x10] sm:$0xff] 0.0
      %29 = vst [vmem:[#allocation2 + $0x18] sm:$0xff] 0.0
      %vm30 = vcmask 64512
      %31 = vst.msk [vmem:[#allocation3] sm:$0xff] %vm30, 0.0
      %32 = vst.msk [vmem:[#allocation3 + $0x8] sm:$0xff] %vm30, 0.0
      %33 = vst.msk [vmem:[#allocation3 + $0x10] sm:$0xff] %vm30, 0.0
      %34 = vst.msk [vmem:[#allocation3 + $0x18] sm:$0xff] %vm30, 0.0
    $region25: #{tpu_custom_call.1} parent=1 // pred_fallthru
      _
    %v35 = vld [vmem:[%s0] sm:$0xf]
    %v36 = vld [vmem:[%s0 + $0x4] sm:$0xf]
    %v37 = vld [vmem:[%s0 + $0x8] sm:$0xf]
    %v38 = vld [vmem:[%s0 + $0xc] sm:$0xf]
    %v39 = vld [vmem:[#allocation2] sm:$0xff]
    %v40 = vld [vmem:[#allocation2 + $0x8] sm:$0xff]
    %v41 = vld [vmem:[#allocation2 + $0x10] sm:$0xff]
    %v42 = vld [vmem:[#allocation2 + $0x18] sm:$0xff]
    %v43 = vld [vmem:[%s1] sm:$0xf]
    %v44 = vld [vmem:[%s1 + $0x4] sm:$0xf]
    %v45 = vld [vmem:[%s1 + $0x8] sm:$0xf]
    %v46 = vld [vmem:[%s1 + $0xc] sm:$0xf]
    %v47 = vld [vmem:[%s1 + $0x10] sm:$0xf]
    %v48 = vld [vmem:[%s1 + $0x14] sm:$0xf]
    %v49 = vld [vmem:[%s1 + $0x18] sm:$0xf]
    %v50 = vld [vmem:[%s1 + $0x1c] sm:$0xf]
    %v51 = vld [vmem:[%s1 + $0x20] sm:$0xf]
    %v52 = vld [vmem:[%s1 + $0x24] sm:$0xf]
    %v53 = vld [vmem:[%s1 + $0x28] sm:$0xf]
    %v54 = vld [vmem:[%s1 + $0x2c] sm:$0xf]
    %v55 = vld [vmem:[%s1 + $0x30] sm:$0xf]
    %v56 = vld [vmem:[%s1 + $0x34] sm:$0xf]
    %v57 = vld [vmem:[%s1 + $0x38] sm:$0xf]
    %v58 = vld [vmem:[%s1 + $0x3c] sm:$0xf]
    %v63 = vunpack.c.l.b16 %v35
    %v64 = vunpack.c.l.b16 %v36
    %v65 = vunpack.c.l.b16 %v37
    %v66 = vunpack.c.l.b16 %v38
    %v67 = vpack.c.b16 %v64, %v63
    %v68 = vpack.c.b16 %v66, %v65
    %v87 = vunpack.c.l.b16 %v43
    %v88 = vunpack.c.l.b16 %v44
    %v89 = vunpack.c.l.b16 %v45
    %v90 = vunpack.c.l.b16 %v46
    %v91 = vunpack.c.l.b16 %v47
    %v92 = vunpack.c.l.b16 %v48
    %v93 = vunpack.c.l.b16 %v49
    %v94 = vunpack.c.l.b16 %v50
    %v95 = vunpack.c.l.b16 %v51
    %v96 = vunpack.c.l.b16 %v52
    %v97 = vunpack.c.l.b16 %v53
    %v98 = vunpack.c.l.b16 %v54
    %v99 = vunpack.c.l.b16 %v55
    %v100 = vunpack.c.l.b16 %v56
    %v101 = vunpack.c.l.b16 %v57
    %v102 = vunpack.c.l.b16 %v58
    %v103 = vpack.c.b16 %v88, %v87
    %v104 = vpack.c.b16 %v90, %v89
    %v105 = vpack.c.b16 %v92, %v91
    %v106 = vpack.c.b16 %v94, %v93
    %v107 = vpack.c.b16 %v96, %v95
    %v108 = vpack.c.b16 %v98, %v97
    %v109 = vpack.c.b16 %v100, %v99
    %v110 = vpack.c.b16 %v102, %v101
    %119 = vmatprep.subr.bf16.mxu0 0
    %120 = vmatpush1.bf16.xpose.msra.mxu0 %v103
    %121 = vmatprep.subr.bf16.mxu0 0
    %122 = vmatpush1.bf16.xpose.msra.mxu0 %v104
    %123 = vmatprep.subr.bf16.mxu0 0
    %124 = vmatpush1.bf16.xpose.msra.mxu0 %v105
    %125 = vmatprep.subr.bf16.mxu0 0
    %126 = vmatpush1.bf16.xpose.msra.mxu0 %v106
    %127 = vmatprep.subr.bf16.mxu0 0
    %128 = vmatpush1.bf16.xpose.msra.mxu0 %v107
    %129 = vmatprep.subr.bf16.mxu0 0
    %130 = vmatpush1.bf16.xpose.msra.mxu0 %v108
    %131 = vmatprep.subr.bf16.mxu0 0
    %132 = vmatpush1.bf16.xpose.msra.mxu0 %v109
    %133 = vmatprep.subr.bf16.mxu0 0
    %134 = vmatpush1.bf16.xpose.msra.mxu0 %v110
    %135 = vmatprep.subr.bf16.mxu0 0
    %136 = vmatpush1.bf16.xpose.msra.mxu0 0
    %137 = vmatprep.subr.bf16.mxu0 0
    %138 = vmatpush1.bf16.xpose.msra.mxu0 0
    %139 = vmatprep.subr.bf16.mxu0 0
    %140 = vmatpush1.bf16.xpose.msra.mxu0 0
    %141 = vmatprep.subr.bf16.mxu0 0
    %142 = vmatpush1.bf16.xpose.msra.mxu0 0
    %143 = vmatprep.subr.bf16.mxu0 0
    %144 = vmatpush1.bf16.xpose.msra.mxu0 0
    %145 = vmatprep.subr.bf16.mxu0 0
    %146 = vmatpush1.bf16.xpose.msra.mxu0 0
    %147 = vmatprep.subr.bf16.mxu0 0
    %148 = vmatpush1.bf16.xpose.msra.mxu0 0
    %149 = vmatprep.subr.bf16.mxu0 0
    %150 = vmatpush1.bf16.xpose.msra.mxu0 0
    %151 = vmatprep.mubr.bf16.mxu0 0
    %152 = vmatmul.mubr.bf16.gmra.mrb[0].mxu0 %v67
    %v153 = vpop.f32.mrb[0].mxu0
    %v154 = vadd.f32 0.0, %v153
    %v155 = vpop.f32.mrb[0].mxu0
    %v156 = vpop.f32.mrb[0].mxu0
    %v157 = vadd.f32 0.0, %v156
    %v158 = vpop.f32.mrb[0].mxu0
    %159 = vmatprep.mubr.bf16.mxu0 0
    %160 = vmatmul.mubr.bf16.gmra.mrb[0].mxu0 %v68
    %v161 = vpop.f32.mrb[0].mxu0
    %v162 = vadd.f32 0.0, %v161
    %v163 = vpop.f32.mrb[0].mxu0
    %v164 = vpop.f32.mrb[0].mxu0
    %v165 = vadd.f32 0.0, %v164
    %v166 = vpop.f32.mrb[0].mxu0
    %167 = vdwg.mxu0
    %v168 = vadd.f32 %v39, %v154
    %v169 = vadd.f32 %v40, %v157
    %v170 = vadd.f32 %v41, %v162
    %v171 = vadd.f32 %v42, %v165
    %172 = vst [vmem:[#allocation2] sm:$0xff] %v168
    %173 = vst [vmem:[#allocation2 + $0x8] sm:$0xff] %v169
    %174 = vst [vmem:[#allocation2 + $0x10] sm:$0xff] %v170
    %175 = vst [vmem:[#allocation2 + $0x18] sm:$0xff] %v171
    %v176 = vld [vmem:[#allocation3] sm:$0xff]
    %v177 = vld [vmem:[#allocation3 + $0x8] sm:$0xff]
    %v178 = vld [vmem:[#allocation3 + $0x10] sm:$0xff]
    %v179 = vld [vmem:[#allocation3 + $0x18] sm:$0xff]
    %v180 = vld [vmem:[%s4] sm:$0xf]
    %181 = vmatprep.subr.bf16.mxu0 0
    %182 = vmatpush1.bf16.xpose.msra.mxu0 %v180
    %183 = vmatprep.subr.bf16.mxu0 0
    %184 = vmatpush1.bf16.xpose.msra.mxu0 0
    %185 = vmatprep.subr.bf16.mxu0 0
    %186 = vmatpush1.bf16.xpose.msra.mxu0 0
    %187 = vmatprep.subr.bf16.mxu0 0
    %188 = vmatpush1.bf16.xpose.msra.mxu0 0
    %189 = vmatprep.subr.bf16.mxu0 0
    %190 = vmatpush1.bf16.xpose.msra.mxu0 0
    %191 = vmatprep.subr.bf16.mxu0 0
    %192 = vmatpush1.bf16.xpose.msra.mxu0 0
    %193 = vmatprep.subr.bf16.mxu0 0
    %194 = vmatpush1.bf16.xpose.msra.mxu0 0
    %195 = vmatprep.subr.bf16.mxu0 0
    %196 = vmatpush1.bf16.xpose.msra.mxu0 0
    %197 = vmatprep.subr.bf16.mxu0 0
    %198 = vmatpush1.bf16.xpose.msra.mxu0 0
    %199 = vmatprep.subr.bf16.mxu0 0
    %200 = vmatpush1.bf16.xpose.msra.mxu0 0
    %201 = vmatprep.subr.bf16.mxu0 0
    %202 = vmatpush1.bf16.xpose.msra.mxu0 0
    %203 = vmatprep.subr.bf16.mxu0 0
    %204 = vmatpush1.bf16.xpose.msra.mxu0 0
    %205 = vmatprep.subr.bf16.mxu0 0
    %206 = vmatpush1.bf16.xpose.msra.mxu0 0
    %207 = vmatprep.subr.bf16.mxu0 0
    %208 = vmatpush1.bf16.xpose.msra.mxu0 0
    %209 = vmatprep.subr.bf16.mxu0 0
    %210 = vmatpush1.bf16.xpose.msra.mxu0 0
    %211 = vmatprep.subr.bf16.mxu0 0
    %212 = vmatpush1.bf16.xpose.msra.mxu0 0
    %213 = vmatprep.mubr.bf16.mxu0 0
    %214 = vmatmul.mubr.bf16.gmra.mrb[0].mxu0 %v67
    %v215 = vpop.f32.mrb[0].mxu0
    %v216 = vadd.f32 0.0, %v215
    %v217 = vpop.f32.mrb[0].mxu0
    %v218 = vpop.f32.mrb[0].mxu0
    %v219 = vadd.f32 0.0, %v218
    %v220 = vpop.f32.mrb[0].mxu0
    %221 = vmatprep.mubr.bf16.mxu0 0
    %222 = vmatmul.mubr.bf16.gmra.mrb[0].mxu0 %v68
    %v223 = vpop.f32.mrb[0].mxu0
    %v224 = vadd.f32 0.0, %v223
    %v225 = vpop.f32.mrb[0].mxu0
    %v226 = vpop.f32.mrb[0].mxu0
    %v227 = vadd.f32 0.0, %v226
    %v228 = vpop.f32.mrb[0].mxu0
    %229 = vdwg.mxu0
    %v230 = vadd.f32 %v176, %v216
    %v231 = vadd.f32 %v177, %v219
    %v232 = vadd.f32 %v178, %v224
    %v233 = vadd.f32 %v179, %v227
    %vm234 = vcmask 64512
    %235 = vst.msk [vmem:[#allocation3] sm:$0xff] %vm234, %v230
    %236 = vst.msk [vmem:[#allocation3 + $0x8] sm:$0xff] %vm234, %v231
    %237 = vst.msk [vmem:[#allocation3 + $0x10] sm:$0xff] %vm234, %v232
    %238 = vst.msk [vmem:[#allocation3 + $0x18] sm:$0xff] %vm234, %v233
    // Predicated region
    $region26: #{tpu_custom_call.1} parent=1 // pred_check
      %p239 = pneg %p22
    $region27: #{tpu_custom_call.1} parent=1 // pred_check_branch
      %241 = sbr.rel (%p239) target = $region29
    $region28: #{tpu_custom_call.1} parent=1 // pred_region
      %v242 = vld [vmem:[#allocation3] sm:$0xff]
      %v243 = vld [vmem:[#allocation3 + $0x8] sm:$0xff]
      %v244 = vld [vmem:[#allocation3 + $0x10] sm:$0xff]
      %v245 = vld [vmem:[#allocation3 + $0x18] sm:$0xff]
      %v246 = vmul.f32 %v242, 2.0
      %v247 = vmul.f32 %v243, 2.0
      %v248 = vmul.f32 %v244, 2.0
      %v249 = vmul.f32 %v245, 2.0
      %v250 = vld [vmem:[%s3] sm:$0xff]
      %v251 = vld [vmem:[%s3 + $0x8] sm:$0xff]
      %v252 = vld [vmem:[%s3 + $0x10] sm:$0xff]
      %v253 = vld [vmem:[%s3 + $0x18] sm:$0xff]
      %v254 = vld [vmem:[%s3 + $0x20] sm:$0xff]
      %v255 = vld [vmem:[%s3 + $0x28] sm:$0xff]
      %v256 = vld [vmem:[%s3 + $0x30] sm:$0xff]
      %v257 = vld [vmem:[%s3 + $0x38] sm:$0xff]
      %v258 = vld [vmem:[%s3 + $0x40] sm:$0xff]
      %v259 = vld [vmem:[%s3 + $0x48] sm:$0xff]
      %v260 = vld [vmem:[%s3 + $0x50] sm:$0xff]
      %v261 = vld [vmem:[%s3 + $0x58] sm:$0xff]
      %v262 = vld [vmem:[%s3 + $0x60] sm:$0xff]
      %v263 = vld [vmem:[%s3 + $0x68] sm:$0xff]
      %v264 = vld [vmem:[%s3 + $0x70] sm:$0xff]
      %v265 = vld [vmem:[%s3 + $0x78] sm:$0xff]
      %v267 = vsel %vm234, %v246, 0
      %v270 = vsel %vm234, %v247, 0
      %v273 = vsel %vm234, %v248, 0
      %v276 = vsel %vm234, %v249, 0
      %v279 = vsel %vm234, %v250, 0
      %v282 = vsel %vm234, %v251, 0
      %v285 = vsel %vm234, %v252, 0
      %v288 = vsel %vm234, %v253, 0
      %v291 = vsel %vm234, %v254, 0
      %v294 = vsel %vm234, %v255, 0
      %v297 = vsel %vm234, %v256, 0
      %v300 = vsel %vm234, %v257, 0
      %v303 = vsel %vm234, %v258, 0
      %v306 = vsel %vm234, %v259, 0
      %v309 = vsel %vm234, %v260, 0
      %v312 = vsel %vm234, %v261, 0
      %v315 = vsel %vm234, %v262, 0
      %v318 = vsel %vm234, %v263, 0
      %v321 = vsel %vm234, %v264, 0
      %v324 = vsel %vm234, %v265, 0
      %326 = vmatprep.subr.mxu0 0.0
      %327 = vmatpush1.xpose.msra.mxu0 %v279
      %328 = vmatprep.subr.mxu0 0.0
      %329 = vmatpush1.xpose.msra.mxu0 %v282
      %330 = vmatprep.subr.mxu0 0.0
      %331 = vmatpush1.xpose.msra.mxu0 %v285
      %332 = vmatprep.subr.mxu0 0.0
      %333 = vmatpush1.xpose.msra.mxu0 %v288
      %334 = vmatprep.subr.mxu0 0.0
      %335 = vmatpush1.xpose.msra.mxu0 %v291
      %336 = vmatprep.subr.mxu0 0.0
      %337 = vmatpush1.xpose.msra.mxu0 %v294
      %338 = vmatprep.subr.mxu0 0.0
      %339 = vmatpush1.xpose.msra.mxu0 %v297
      %340 = vmatprep.subr.mxu0 0.0
      %341 = vmatpush1.xpose.msra.mxu0 %v300
      %342 = vmatprep.subr.mxu0 0.0
      %343 = vmatpush1.xpose.msra.mxu0 %v303
      %344 = vmatprep.subr.mxu0 0.0
      %345 = vmatpush1.xpose.msra.mxu0 %v306
      %346 = vmatprep.subr.mxu0 0.0
      %347 = vmatpush1.xpose.msra.mxu0 %v309
      %348 = vmatprep.subr.mxu0 0.0
      %349 = vmatpush1.xpose.msra.mxu0 %v312
      %350 = vmatprep.subr.mxu0 0.0
      %351 = vmatpush1.xpose.msra.mxu0 %v315
      %352 = vmatprep.subr.mxu0 0.0
      %353 = vmatpush1.xpose.msra.mxu0 %v318
      %354 = vmatprep.subr.mxu0 0.0
      %355 = vmatpush1.xpose.msra.mxu0 %v321
      %356 = vmatprep.subr.mxu0 0.0
      %357 = vmatpush1.xpose.msra.mxu0 %v324
      %358 = vmatprep.subr.mxu0 0.0
      %359 = vmatpush1.xpose.msra.mxu0 0.0
      %360 = vmatprep.subr.mxu0 0.0
      %361 = vmatpush1.xpose.msra.mxu0 0.0
      %362 = vmatprep.subr.mxu0 0.0
      %363 = vmatpush1.xpose.msra.mxu0 0.0
      %364 = vmatprep.subr.mxu0 0.0
      %365 = vmatpush1.xpose.msra.mxu0 0.0
      %366 = vmatprep.subr.mxu0 0.0
      %367 = vmatpush1.xpose.msra.mxu0 0.0
      %368 = vmatprep.subr.mxu0 0.0
      %369 = vmatpush1.xpose.msra.mxu0 0.0
      %370 = vmatprep.subr.mxu0 0.0
      %371 = vmatpush1.xpose.msra.mxu0 0.0
      %372 = vmatprep.subr.mxu0 0.0
      %373 = vmatpush1.xpose.msra.mxu0 0.0
      %374 = vmatprep.subr.mxu0 0.0
      %375 = vmatpush1.xpose.msra.mxu0 0.0
      %376 = vmatprep.subr.mxu0 0.0
      %377 = vmatpush1.xpose.msra.mxu0 0.0
      %378 = vmatprep.subr.mxu0 0.0
      %379 = vmatpush1.xpose.msra.mxu0 0.0
      %380 = vmatprep.subr.mxu0 0.0
      %381 = vmatpush1.xpose.msra.mxu0 0.0
      %382 = vmatprep.subr.mxu0 0.0
      %383 = vmatpush1.xpose.msra.mxu0 0.0
      %384 = vmatprep.subr.mxu0 0.0
      %385 = vmatpush1.xpose.msra.mxu0 0.0
      %386 = vmatprep.subr.mxu0 0.0
      %387 = vmatpush1.xpose.msra.mxu0 0.0
      %388 = vmatprep.subr.mxu0 0.0
      %389 = vmatpush1.xpose.msra.mxu0 0.0
      %390 = vmatprep.mubr.f32.mxu0 0.0
      %391 = vmatmul.mubr.f32.gmra.mrb[0].mxu0 %v267
      %v392 = vpop.f32.mrb[0].mxu0
      %v393 = vadd.f32 0.0, %v392
      %v394 = vpop.f32.mrb[0].mxu0
      %395 = vmatprep.mubr.f32.mxu0 0.0
      %396 = vmatmul.mubr.f32.gmra.mrb[0].mxu0 %v270
      %v397 = vpop.f32.mrb[0].mxu0
      %v398 = vadd.f32 0.0, %v397
      %v399 = vpop.f32.mrb[0].mxu0
      %400 = vmatprep.mubr.f32.mxu0 0.0
      %401 = vmatmul.mubr.f32.gmra.mrb[0].mxu0 %v273
      %v402 = vpop.f32.mrb[0].mxu0
      %v403 = vadd.f32 0.0, %v402
      %v404 = vpop.f32.mrb[0].mxu0
      %405 = vmatprep.mubr.f32.mxu0 0.0
      %406 = vmatmul.mubr.f32.gmra.mrb[0].mxu0 %v276
      %v407 = vpop.f32.mrb[0].mxu0
      %v408 = vadd.f32 0.0, %v407
      %v409 = vpop.f32.mrb[0].mxu0
      %410 = vdwg.mxu0
      %v411 = vld [vmem:[#allocation2] sm:$0xff]
      %v412 = vld [vmem:[#allocation2 + $0x8] sm:$0xff]
      %v413 = vld [vmem:[#allocation2 + $0x10] sm:$0xff]
      %v414 = vld [vmem:[#allocation2 + $0x18] sm:$0xff]
      %v415 = vld [vmem:[%s2] sm:$0x1]
      %v417 = vlaneseq
      %v418 = vshrl.u32 %v417, 7
      %v419 = vsub.s32 0, %v418
      %v420 = vrot.slane %v415, %v419
      %v422 = vadd.f32 %v411, %v420
      %v423 = vadd.f32 %v412, %v420
      %v424 = vadd.f32 %v413, %v420
      %v425 = vadd.f32 %v414, %v420
      %v426 = vadd.f32 %v422, %v393
      %v427 = vadd.f32 %v423, %v398
      %v428 = vadd.f32 %v424, %v403
      %v429 = vadd.f32 %v425, %v408
      %430 = vst [vmem:[#allocation4] sm:$0xff] %v426
      %431 = vst [vmem:[#allocation4 + $0x8] sm:$0xff] %v427
      %432 = vst [vmem:[#allocation4 + $0x10] sm:$0xff] %v428
      %433 = vst [vmem:[#allocation4 + $0x18] sm:$0xff] %v429
    $region29: #{tpu_custom_call.1} parent=1 // pred_fallthru
      _
    // Predicated region
    $region30: #{tpu_custom_call.1} parent=1 // pred_check
      _
    $region31: #{tpu_custom_call.1} parent=1 // pred_check_branch
      %435 = sbr.rel (0) target = $region33
    $region32: #{tpu_custom_call.1} parent=1 // pred_region
      %s437 = ssub.s32 512, 512
      %438 = vsyncadd [#allocation5], %s437
      %s439 = sshll.u32 [#allocation4], 4
      %s440 = int_to_ptr.vmem [resolvable:$true] %s439
      %445 = dma.vmem_to_hbm [thread:$0]  %s440, 512, %s5, [#allocation5], 128, 128, 8
    $region33: #{tpu_custom_call.1} parent=1 // pred_fallthru
      _
    // Predicated region
    $region34: #{tpu_custom_call.1} parent=1 // pred_check
      _
    $region35: #{tpu_custom_call.1} parent=1 // pred_check_branch
      %447 = sbr.rel (0) target = $region37
    $region36: #{tpu_custom_call.1} parent=1 // pred_region
      %448 = dma.done [#allocation5], 512
    $region37: #{tpu_custom_call.1} parent=1 // pred_fallthru
      _
    %449 = vsyncpa [#allocation5], 1

</llo_original>
